<compile_context>
chip_gen: v7x
topology: tpu7x:2x2x1
jax: 0.10.0
libtpu: 0.0.40
codegen_flags: <defaults>
</compile_context>

<pallas_src>
import math

import jax
import jax.numpy as jnp
from jax.experimental import pallas as pl
from jax.experimental.pallas import tpu as pltpu

LANE = 128                        # TPU vreg lane width
TARGET_BLOCK_OUT_BYTES = 2 << 20  # ~2 MiB of f32 output per grid step
TINY_BYPASS_OUT_BYTES = 256 << 10 # below this, plain x.astype is faster


def _cast_kernel(x_ref, o_ref):
    # Pure elementwise dtype cast; VPU-only, no MXU/XLU.
    o_ref[...] = x_ref[...].astype(o_ref.dtype)


def cast_to_float(x, *, force_pallas=False):
    """Pallas equivalent of PyTorch `x.to(torch.float)` -> float32, same shape."""
    orig_shape = x.shape
    total = math.prod(orig_shape) if len(orig_shape) else 1

    # Empty arrays: nothing to stream.
    if total == 0:
        return x.astype(jnp.float32)

    # Tiny inputs: launch + DMA-setup cost dominates; let XLA fuse the convert.
    if not force_pallas and total * 4 < TINY_BYPASS_OUT_BYTES:
        return x.astype(jnp.float32)

    # --- lane-dense 2-D view (pad to a multiple of 8*128) -------------------
    padded_total = -(-total // (8 * LANE)) * (8 * LANE)
    cols = LANE
    for c in (4 * LANE, 2 * LANE):          # prefer wider lane-dense rows
        if padded_total % (c * 8) == 0:
            cols = c
            break
    rows = padded_total // cols             # guaranteed multiple of 8

    flat = x.reshape(-1)
    if padded_total != total:
        flat = jnp.pad(flat, (0, padded_total - total))
    x2 = flat.reshape(rows, cols)

    # --- row tiling: ~2 MiB of output per grid step --------------------------
    out_itemsize = 4
    in_itemsize = x.dtype.itemsize
    target_tile_rows = max(8, (TARGET_BLOCK_OUT_BYTES // (cols * out_itemsize)) // 8 * 8)
    tile_rows = min(rows, target_tile_rows)

    # Ensure several grid steps when possible so "parallel" can shard across
    # both TensorCores on v7x (and pipelining has something to overlap).
    max_steps = rows // 8
    desired_steps = min(4, max_steps)
    if desired_steps > 1 and pl.cdiv(rows, tile_rows) < desired_steps:
        tile_rows = max(8, ((pl.cdiv(rows, desired_steps) + 7) // 8) * 8)
    grid_rows = pl.cdiv(rows, tile_rows)

    # --- VMEM budget: 2x(in_tile + out_tile) double-buffered + headroom ------
    block_bytes = tile_rows * cols * (in_itemsize + out_itemsize)
    vmem_limit = int(min(max(2 * block_bytes + (2 << 20), 8 << 20), 48 << 20))

    cost = pl.CostEstimate(
        flops=0,
        transcendentals=0,
        bytes_accessed=int(total * in_itemsize + total * out_itemsize),
    )

    out2 = pl.pallas_call(
        _cast_kernel,
        out_shape=jax.ShapeDtypeStruct((rows, cols), jnp.float32),
        grid=(grid_rows,),
        in_specs=[pl.BlockSpec((tile_rows, cols), lambda i: (i, 0))],
        out_specs=pl.BlockSpec((tile_rows, cols), lambda i: (i, 0)),
        compiler_params=pltpu.CompilerParams(
            dimension_semantics=("parallel",),
            vmem_limit_bytes=vmem_limit,
        ),
        cost_estimate=cost,
    )(x2)

    out_flat = out2.reshape(-1)
    if padded_total != total:
        out_flat = out_flat[:total]
    return out_flat.reshape(orig_shape)


if __name__ == "__main__":
    key = jax.random.PRNGKey(0)
    k1, k2, k3 = jax.random.split(key, 3)

    # Case 1 (spec shape): int32 (2,4,16,16) -> force the Pallas path so the
    # kernel itself is exercised at the small spec shape.
    x_int = jax.random.randint(k1, (2, 4, 16, 16), minval=-100, maxval=100,
                               dtype=jnp.int32)
    out = jax.block_until_ready(cast_to_float(x_int, force_pallas=True))
    ref = x_int.astype(jnp.float32)
    assert out.shape == x_int.shape and out.dtype == jnp.float32
    assert jnp.array_equal(out, ref), "int32 -> float32 cast mismatch"

    # Case 2: bf16, element count NOT a multiple of 128 -> pad-and-slice path.
    x_bf16 = jax.random.normal(k2, (2, 3, 5), dtype=jnp.bfloat16)
    out2 = jax.block_until_ready(cast_to_float(x_bf16, force_pallas=True))
    ref2 = x_bf16.astype(jnp.float32)
    assert out2.shape == x_bf16.shape and out2.dtype == jnp.float32
    assert jnp.array_equal(out2, ref2), "bfloat16 -> float32 cast mismatch"

    # Case 3: medium int32 tensor -> takes the Pallas path without forcing,
    # exercises wide-cols selection and multi-step grid.
    x_med = jax.random.randint(k3, (8, 256, 128), minval=-1000, maxval=1000,
                               dtype=jnp.int32)
    out3 = jax.block_until_ready(cast_to_float(x_med))
    ref3 = x_med.astype(jnp.float32)
    assert out3.shape == x_med.shape and out3.dtype == jnp.float32
    assert jnp.array_equal(out3, ref3), "medium int32 -> float32 cast mismatch"

    # Case 4: empty array -> early return, no reshape blow-up.
    x_empty = jnp.zeros((0, 4), dtype=jnp.int32)
    out4 = jax.block_until_ready(cast_to_float(x_empty))
    assert out4.shape == (0, 4) and out4.dtype == jnp.float32

    print("KERNEL_OK")
</pallas_src>

<mosaic_0001>
module attributes {stable_mosaic.version = 11 : i64} {
  func.func @_cast_kernel(%arg0: i32, %arg1: memref<8x256xi32, #tpu.memory_space<vmem>>, %arg2: memref<8x256xf32, #tpu.memory_space<vmem>>) attributes {dimension_semantics = [#tpu.dimension_semantics<parallel>], iteration_bounds = array<i64: 1>, scalar_prefetch = 0 : i64, scratch_operands = 0 : i64, tpu.core_type = #tpu.core_type<tc>, window_params = [{transform_indices = @transform_0, window_bounds = array<i64: 8, 256>}, {transform_indices = @transform_1, window_bounds = array<i64: 8, 256>}]} {
    %c0 = arith.constant 0 : index
    %c0_0 = arith.constant 0 : index
    %0 = vector.load %arg1[%c0, %c0_0] : memref<8x256xi32, #tpu.memory_space<vmem>>, vector<8x256xi32>
    %1 = arith.sitofp %0 : vector<8x256xi32> to vector<8x256xf32>
    %c0_1 = arith.constant 0 : index
    %c0_2 = arith.constant 0 : index
    %2 = vector.load %arg2[%c0_1, %c0_2] : memref<8x256xf32, #tpu.memory_space<vmem>>, vector<8x256xf32>
    tpu.vector_store %arg2[%c0_1, %c0_2], %1 {strides = array<i32>} : memref<8x256xf32, #tpu.memory_space<vmem>>, vector<8x256xf32>,
    return
  }
  func.func @transform_0(%arg0: i32) -> (i32, i32) {
    %c0_i32 = arith.constant 0 : i32
    %c0_i32_0 = arith.constant 0 : i32
    return %arg0, %c0_i32 : i32, i32
  }
  func.func @transform_1(%arg0: i32) -> (i32, i32) {
    %c0_i32 = arith.constant 0 : i32
    %c0_i32_0 = arith.constant 0 : i32
    return %arg0, %c0_i32 : i32, i32
  }
}

</mosaic_0001>

<llo_original>
// kernel: tpu_custom_call.1
$region0: #{tpu_custom_call.1}
  #allocation0 [shape = 'u32[]', space=smem, size = 0x4, offset = 0x4, fixed_abs, tag = 'smem constant byte address 0x4 - core index']
  #allocation1 [shape = 'u32[144,128]{1,0:T(1,128)}', space=vmem, size = 0x12000, scoped, tag = 'internal scratch']
  %s0 = inlined_call_operand.hbm [shape: s32[8,256], index: 0, kind: input, shape index: {}]
  %s1 = inlined_call_operand.hbm [shape: f32[8,256], index: 1, kind: output, shape index: {}]
  %s2 = sld [smem:[#allocation0]]
  $region18: #{tpu_custom_call.1} parent=0
    _
  %s4 = ssub.s32 1, %s2
  %s5 = scalar_select 0, %s4, %s2
  $region1: #{tpu_custom_call.1} parent=0
    #allocation2 [shape = 'u8[8192]{0}', space=vmem, size = 0x2000, scoped, tag = 'input window, operand 0, single buffered']
    #allocation3 [shape = 's32[1]{0}', space=sflag, size = 0x4, scoped, tag = 'scoped memory for tpu_custom_call.1']
    #allocation4 [shape = 's32[1]{0}', space=sflag, size = 0x4, scoped, tag = 'scoped memory for tpu_custom_call.1']
    #allocation5 [shape = 'u8[8192]{0}', space=vmem, size = 0x2000, scoped, tag = 'output window, operand 0, single buffered']
    %6 = vsyncpa [#allocation3], 0
    %7 = vsyncpa [#allocation4], 0
    // Predicated region
    $region2: #{tpu_custom_call.1} parent=1 // pred_check
      _
    $region3: #{tpu_custom_call.1} parent=1 // pred_check_branch
      %9 = sbr.rel (0) target = $region5
    $region4: #{tpu_custom_call.1} parent=1 // pred_region
      %s11 = ssub.s32 256, 256
      %12 = vsyncadd [#allocation3], %s11
      %s14 = sshll.u32 [#allocation2], 4
      %s15 = int_to_ptr.vmem [resolvable:$true] %s14
      %17 = dma.hbm_to_vmem [thread:$0]  %s0, 256, %s15, [#allocation3]
    $region5: #{tpu_custom_call.1} parent=1 // pred_fallthru
      _
    // Predicated region
    $region6: #{tpu_custom_call.1} parent=1 // pred_check
      _
    $region7: #{tpu_custom_call.1} parent=1 // pred_check_branch
      %19 = sbr.rel (0) target = $region9
    $region8: #{tpu_custom_call.1} parent=1 // pred_region
      %20 = dma.done [#allocation3], 256
    $region9: #{tpu_custom_call.1} parent=1 // pred_fallthru
      _
    %v21 = vld [vmem:[#allocation2] sm:$0xff]
    %v22 = vld [vmem:[#allocation2 + $0x8] sm:$0xff]
    %v23 = vcvt.s32.f32 %v21
    %v24 = vcvt.s32.f32 %v22
    %25 = vst [vmem:[#allocation5] sm:$0xff] %v23
    %26 = vst [vmem:[#allocation5 + $0x8] sm:$0xff] %v24
    // Predicated region
    $region10: #{tpu_custom_call.1} parent=1 // pred_check
      _
    $region11: #{tpu_custom_call.1} parent=1 // pred_check_branch
      %28 = sbr.rel (0) target = $region13
    $region12: #{tpu_custom_call.1} parent=1 // pred_region
      %s30 = ssub.s32 256, 256
      %31 = vsyncadd [#allocation4], %s30
      %s33 = sshll.u32 [#allocation5], 4
      %s34 = int_to_ptr.vmem [resolvable:$true] %s33
      %36 = dma.vmem_to_hbm [thread:$0]  %s34, 256, %s1, [#allocation4]
    $region13: #{tpu_custom_call.1} parent=1 // pred_fallthru
      _
    // Predicated region
    $region14: #{tpu_custom_call.1} parent=1 // pred_check
      _
    $region15: #{tpu_custom_call.1} parent=1 // pred_check_branch
      %38 = sbr.rel (0) target = $region17
    $region16: #{tpu_custom_call.1} parent=1 // pred_region
      %39 = dma.done [#allocation4], 256
    $region17: #{tpu_custom_call.1} parent=1 // pred_fallthru
      _
    %40 = vsyncpa [#allocation3], 1
    %41 = vsyncpa [#allocation4], 1

</llo_original>
